<compile_context>
chip_gen: v6e
topology: v6e:2x2x1
jax: 0.10.0
libtpu: 0.0.40
codegen_flags: <defaults>
</compile_context>

<pallas_src>
import numpy as np

import jax
import jax.numpy as jnp
from jax.experimental import pallas as pl
from jax.experimental.pallas import tpu as pltpu


def make_classifier_weight(shape: int, region_size: int) -> jnp.ndarray:
    """Deterministic weight construction mirroring Classifier.__init__."""
    if shape < 4 * region_size:
        raise ValueError("shape must be at least 4*region_size")
    weight = jnp.zeros((10, shape, shape), dtype=jnp.float32)
    row_offset = (shape - 4 * region_size) // 2
    col_offset = (shape - 3 * region_size) // 2

    def set_region(w, digit, row, col):
        sr = row * region_size + row_offset
        sc = col * region_size + col_offset
        return w.at[digit, sr:sr + region_size, sc:sc + region_size].set(1.0)

    weight = set_region(weight, 0, 3, 1)
    for digit in range(1, 10):
        row, col = (digit - 1) // 3, (digit - 1) % 3
        weight = set_region(weight, digit, row, col)
    return weight


def _round_up(x: int, m: int) -> int:
    return ((x + m - 1) // m) * m


def _classifier_kernel(x_ref, w_ref, o_ref):
    # x_ref: (TB, D) batch tile, w_ref: (D, Np) VMEM-resident weight,
    # o_ref: (TB, Np).  Contraction over D runs on the MXU; weight is already
    # (D, N) so no transpose / XLU relayout happens in-kernel.
    o_ref[...] = jnp.dot(
        x_ref[...], w_ref[...], preferred_element_type=jnp.float32
    )


# VMEM sizing: target a <= ~24 MiB working set and pass an explicit 32 MiB
# scoped limit (v5e's default is 16 MiB scoped; v7x is 64 MiB physical / TC).
_VMEM_BUDGET = 24 << 20
_VMEM_LIMIT = 32 << 20
_TB_CAP = 4096
_FAST_PATH_BYTES = 256 << 10   # if all of x is this small, just use XLA einsum


def classifier_forward(x, weight, *, compute_dtype=jnp.float32,
                       force_kernel=False):
    """x: (B, S, S), weight: (N, S, S) -> (B, N) float32."""
    b, s, _ = x.shape
    n = weight.shape[0]
    d = s * s
    itemsize = np.dtype(compute_dtype).itemsize

    # Small-problem fast path: pallas_call fixed overhead dominates here.
    if not force_kernel and b * d * itemsize <= _FAST_PATH_BYTES:
        return jnp.einsum("nxy,bxy->bn",
                          weight.astype(jnp.float32),
                          x.astype(jnp.float32))

    n_pad = _round_up(n, 8)                       # 10 -> 16 output lanes

    # Batch tile: as large as the VMEM budget allows (double-buffered x/out
    # plus the small resident weight), then capped so large batches still get
    # >= 2 grid steps (v7x megacore), and never larger than the batch itself.
    def working_set(tb):
        return (2 * tb * d * itemsize             # x, double-buffered
                + 2 * d * n_pad * itemsize        # weight (conservatively x2)
                + 2 * tb * n_pad * 4)             # f32 output, double-buffered

    tb = _TB_CAP
    while tb > 16 and working_set(tb) > _VMEM_BUDGET:
        tb //= 2
    if b > 512:
        tb = min(tb, _round_up(pl.cdiv(b, 2), 16))   # >= 2 steps for megacore
    if tb >= b:
        tb = b                      # single block == full batch dim (exempt)
    grid = (pl.cdiv(b, tb),)        # ragged final block handled by Pallas

    # Wrapper-side layout prep: x reshape is a free view (no HBM copy); the
    # weight is tiny and constant so its transpose/pad cost is negligible.
    x_flat = x.reshape(b, d).astype(compute_dtype)
    w_t = weight.reshape(n, d).astype(compute_dtype).T       # (D, N)
    w_t = jnp.pad(w_t, ((0, 0), (0, n_pad - n)))             # (D, Np)

    out = pl.pallas_call(
        _classifier_kernel,
        out_shape=jax.ShapeDtypeStruct((b, n_pad), jnp.float32),
        grid=grid,
        in_specs=[
            pl.BlockSpec((tb, d), lambda i: (i, 0)),        # x: tiled over batch
            pl.BlockSpec((d, n_pad), lambda i: (0, 0)),     # weight: VMEM-resident
        ],
        out_specs=pl.BlockSpec((tb, n_pad), lambda i: (i, 0)),
        compiler_params=pltpu.CompilerParams(
            dimension_semantics=("parallel",),
            vmem_limit_bytes=_VMEM_LIMIT,
        ),
        cost_estimate=pl.CostEstimate(
            flops=2 * b * n_pad * d,
            transcendentals=0,
            bytes_accessed=(b * d * itemsize
                            + d * n_pad * itemsize
                            + b * n_pad * 4),
        ),
    )(x_flat, w_t)

    # Slice off the (tiny) output-column padding; no batch padding exists.
    return out[:, :n]


if __name__ == "__main__":
    shape = 16        # spatial size (shape >= 4*region_size)
    region_size = 4

    weight = make_classifier_weight(shape, region_size)
    key = jax.random.PRNGKey(0)

    # --- Small demo (module-sized input). ---
    batch = 2
    x_small = jax.random.normal(key, (batch, shape, shape), dtype=jnp.float32)
    ref_small = jnp.einsum("nxy,bxy->bn", weight, x_small)

    out_fast = classifier_forward(x_small, weight)                      # einsum fast path
    out_kern = classifier_forward(x_small, weight, force_kernel=True)   # Pallas kernel path
    jax.block_until_ready((out_fast, out_kern))

    assert out_fast.shape == (batch, 10)
    assert out_kern.shape == (batch, 10)
    assert jnp.allclose(out_fast, ref_small, atol=1e-4, rtol=1e-4)
    assert jnp.allclose(out_kern, ref_small, atol=1e-4, rtol=1e-4)

    # --- Moderate batch: multi-step grid + ragged final block via the kernel. ---
    batch2 = 600
    x_big = jax.random.normal(jax.random.split(key)[0],
                              (batch2, shape, shape), dtype=jnp.float32)
    out_big = classifier_forward(x_big, weight)
    out_big = jax.block_until_ready(out_big)
    ref_big = jnp.einsum("nxy,bxy->bn", weight, x_big)
    assert out_big.shape == (batch2, 10)
    assert jnp.allclose(out_big, ref_big, atol=1e-3, rtol=1e-3)

    print("KERNEL_OK")
</pallas_src>

<mosaic_0001>
module attributes {stable_mosaic.version = 11 : i64} {
  func.func @_classifier_kernel(%arg0: i32, %arg1: memref<2x256xf32, #tpu.memory_space<vmem>>, %arg2: memref<256x16xf32, #tpu.memory_space<vmem>>, %arg3: memref<2x16xf32, #tpu.memory_space<vmem>>) attributes {dimension_semantics = [#tpu.dimension_semantics<parallel>], iteration_bounds = array<i64: 1>, scalar_prefetch = 0 : i64, scratch_operands = 0 : i64, tpu.core_type = #tpu.core_type<tc>, window_params = [{transform_indices = @transform_0, window_bounds = array<i64: 2, 256>}, {pipeline_mode = #tpu.pipeline_mode<synchronous>, transform_indices = @transform_1, window_bounds = array<i64: 256, 16>}, {transform_indices = @transform_2, window_bounds = array<i64: 2, 16>}]} {
    %c0 = arith.constant 0 : index
    %c0_0 = arith.constant 0 : index
    %0 = vector.load %arg1[%c0, %c0_0] : memref<2x256xf32, #tpu.memory_space<vmem>>, vector<2x256xf32>
    %c0_1 = arith.constant 0 : index
    %c0_2 = arith.constant 0 : index
    %1 = vector.load %arg2[%c0_1, %c0_2] : memref<256x16xf32, #tpu.memory_space<vmem>>, vector<256x16xf32>
    %cst = arith.constant dense<0.000000e+00> : vector<2x16xf32>
    %2 = tpu.matmul %0, %1, %cst {dimension_numbers = #tpu.dot_dimension_numbers<[1], [0], [0], [1], [0, 0, 1, 1], [], []>} : vector<2x256xf32>, vector<256x16xf32>, vector<2x16xf32> -> vector<2x16xf32>
    %c0_3 = arith.constant 0 : index
    %c0_4 = arith.constant 0 : index
    %3 = vector.load %arg3[%c0_3, %c0_4] : memref<2x16xf32, #tpu.memory_space<vmem>>, vector<2x16xf32>
    tpu.vector_store %arg3[%c0_3, %c0_4], %2 {strides = array<i32>} : memref<2x16xf32, #tpu.memory_space<vmem>>, vector<2x16xf32>,
    return
  }
  func.func @transform_0(%arg0: i32) -> (i32, i32) {
    %c0_i32 = arith.constant 0 : i32
    %c0_i32_0 = arith.constant 0 : i32
    return %arg0, %c0_i32 : i32, i32
  }
  func.func @transform_1(%arg0: i32) -> (i32, i32) {
    %c0_i32 = arith.constant 0 : i32
    %c0_i32_0 = arith.constant 0 : i32
    %c0_i32_1 = arith.constant 0 : i32
    return %c0_i32, %c0_i32_0 : i32, i32
  }
  func.func @transform_2(%arg0: i32) -> (i32, i32) {
    %c0_i32 = arith.constant 0 : i32
    %c0_i32_0 = arith.constant 0 : i32
    return %arg0, %c0_i32 : i32, i32
  }
}

</mosaic_0001>

<llo_original>
// kernel: tpu_custom_call.1
$region0: #{tpu_custom_call.1}
  #allocation0 [shape = 'u32[]', space=smem, size = 0x4, offset = 0x4, fixed_abs, tag = 'smem constant byte address 0x4 - core index']
  #allocation1 [shape = 'u32[144,128]{1,0:T(1,128)}', space=vmem, size = 0x12000, scoped, tag = 'internal scratch']
  %s0 = inlined_call_operand.vmem [shape: f32[2,256], index: 0, kind: input, shape index: {}]
  %s1 = inlined_call_operand.vmem [shape: f32[256,16], index: 1, kind: input, shape index: {}]
  %s2 = inlined_call_operand.hbm [shape: f32[2,16], index: 2, kind: output, shape index: {}]
  %s3 = sld [smem:[#allocation0]]
  $region18: #{tpu_custom_call.1} parent=0
    _
  %s5 = ssub.s32 1, %s3
  %s6 = scalar_select 0, %s5, %s3
  $region1: #{tpu_custom_call.1} parent=0
    #allocation2 [shape = 'u8[1024]{0}', space=vmem, size = 0x400, scoped, tag = 'output window, operand 0, single buffered']
    #allocation3 [shape = 's32[1]{0}', space=sflag, size = 0x4, scoped, tag = 'scoped memory for tpu_custom_call.1']
    %7 = vsyncpa [#allocation3], 0
    // Predicated region
    $region2: #{tpu_custom_call.1} parent=1 // pred_check
      _
    $region3: #{tpu_custom_call.1} parent=1 // pred_check_branch
      %9 = sbr.rel (0) target = $region5
    $region4: #{tpu_custom_call.1} parent=1 // pred_region
      _
    $region5: #{tpu_custom_call.1} parent=1 // pred_fallthru
      _
    // Predicated region
    $region6: #{tpu_custom_call.1} parent=1 // pred_check
      _
    $region7: #{tpu_custom_call.1} parent=1 // pred_check_branch
      %11 = sbr.rel (0) target = $region9
    $region8: #{tpu_custom_call.1} parent=1 // pred_region
      _
    $region9: #{tpu_custom_call.1} parent=1 // pred_fallthru
      _
    %v12 = vld [vmem:[%s0] sm:$0xf]
    %v13 = vld [vmem:[%s1] sm:$0xff]
    %v14 = vld [vmem:[%s1 + $0x8] sm:$0xff]
    %v15 = vld [vmem:[%s1 + $0x10] sm:$0xff]
    %v16 = vld [vmem:[%s1 + $0x18] sm:$0xff]
    %v17 = vld [vmem:[%s1 + $0x20] sm:$0xff]
    %v18 = vld [vmem:[%s1 + $0x28] sm:$0xff]
    %v19 = vld [vmem:[%s1 + $0x30] sm:$0xff]
    %v20 = vld [vmem:[%s1 + $0x38] sm:$0xff]
    %v21 = vld [vmem:[%s1 + $0x40] sm:$0xff]
    %v22 = vld [vmem:[%s1 + $0x48] sm:$0xff]
    %v23 = vld [vmem:[%s1 + $0x50] sm:$0xff]
    %v24 = vld [vmem:[%s1 + $0x58] sm:$0xff]
    %v25 = vld [vmem:[%s1 + $0x60] sm:$0xff]
    %v26 = vld [vmem:[%s1 + $0x68] sm:$0xff]
    %v27 = vld [vmem:[%s1 + $0x70] sm:$0xff]
    %v28 = vld [vmem:[%s1 + $0x78] sm:$0xff]
    %v29 = vld [vmem:[%s1 + $0x80] sm:$0xff]
    %v30 = vld [vmem:[%s1 + $0x88] sm:$0xff]
    %v31 = vld [vmem:[%s1 + $0x90] sm:$0xff]
    %v32 = vld [vmem:[%s1 + $0x98] sm:$0xff]
    %v33 = vld [vmem:[%s1 + $0xa0] sm:$0xff]
    %v34 = vld [vmem:[%s1 + $0xa8] sm:$0xff]
    %v35 = vld [vmem:[%s1 + $0xb0] sm:$0xff]
    %v36 = vld [vmem:[%s1 + $0xb8] sm:$0xff]
    %v37 = vld [vmem:[%s1 + $0xc0] sm:$0xff]
    %v38 = vld [vmem:[%s1 + $0xc8] sm:$0xff]
    %v39 = vld [vmem:[%s1 + $0xd0] sm:$0xff]
    %v40 = vld [vmem:[%s1 + $0xd8] sm:$0xff]
    %v41 = vld [vmem:[%s1 + $0xe0] sm:$0xff]
    %v42 = vld [vmem:[%s1 + $0xe8] sm:$0xff]
    %v43 = vld [vmem:[%s1 + $0xf0] sm:$0xff]
    %v44 = vld [vmem:[%s1 + $0xf8] sm:$0xff]
    %v47 = vunpack.c.l.s4 1983009808
    %v48 = vunpack.c.0.s8 %v47
    %v49 = vlaneseq
    %v50 = vshrl.u32 %v49, 7
    %v51 = vsub.s32 %v48, %v50
    %v52 = vrot.slane %v12, %v51
    %v53 = vcombine.high %v52, %v52
    %56 = vmatprep.subr.mxu0 0.0
    %57 = vmatpush1.msra.mxu0 %v28
    %58 = vmatprep.subr.mxu0 0.0
    %59 = vmatpush1.msra.mxu0 %v27
    %60 = vmatprep.subr.mxu0 0.0
    %61 = vmatpush1.msra.mxu0 %v26
    %62 = vmatprep.subr.mxu0 0.0
    %63 = vmatpush1.msra.mxu0 %v25
    %64 = vmatprep.subr.mxu0 0.0
    %65 = vmatpush1.msra.mxu0 %v24
    %66 = vmatprep.subr.mxu0 0.0
    %67 = vmatpush1.msra.mxu0 %v23
    %68 = vmatprep.subr.mxu0 0.0
    %69 = vmatpush1.msra.mxu0 %v22
    %70 = vmatprep.subr.mxu0 0.0
    %71 = vmatpush1.msra.mxu0 %v21
    %72 = vmatprep.subr.mxu0 0.0
    %73 = vmatpush1.msra.mxu0 %v20
    %74 = vmatprep.subr.mxu0 0.0
    %75 = vmatpush1.msra.mxu0 %v19
    %76 = vmatprep.subr.mxu0 0.0
    %77 = vmatpush1.msra.mxu0 %v18
    %78 = vmatprep.subr.mxu0 0.0
    %79 = vmatpush1.msra.mxu0 %v17
    %80 = vmatprep.subr.mxu0 0.0
    %81 = vmatpush1.msra.mxu0 %v16
    %82 = vmatprep.subr.mxu0 0.0
    %83 = vmatpush1.msra.mxu0 %v15
    %84 = vmatprep.subr.mxu0 0.0
    %85 = vmatpush1.msra.mxu0 %v14
    %86 = vmatprep.subr.mxu0 0.0
    %87 = vmatpush1.msra.mxu0 %v13
    %88 = vmatprep.subr.mxu0 0.0
    %89 = vmatpush2.msra.mxu0 %v44
    %90 = vmatprep.subr.mxu0 0.0
    %91 = vmatpush2.msra.mxu0 %v43
    %92 = vmatprep.subr.mxu0 0.0
    %93 = vmatpush2.msra.mxu0 %v42
    %94 = vmatprep.subr.mxu0 0.0
    %95 = vmatpush2.msra.mxu0 %v41
    %96 = vmatprep.subr.mxu0 0.0
    %97 = vmatpush2.msra.mxu0 %v40
    %98 = vmatprep.subr.mxu0 0.0
    %99 = vmatpush2.msra.mxu0 %v39
    %100 = vmatprep.subr.mxu0 0.0
    %101 = vmatpush2.msra.mxu0 %v38
    %102 = vmatprep.subr.mxu0 0.0
    %103 = vmatpush2.msra.mxu0 %v37
    %104 = vmatprep.subr.mxu0 0.0
    %105 = vmatpush2.msra.mxu0 %v36
    %106 = vmatprep.subr.mxu0 0.0
    %107 = vmatpush2.msra.mxu0 %v35
    %108 = vmatprep.subr.mxu0 0.0
    %109 = vmatpush2.msra.mxu0 %v34
    %110 = vmatprep.subr.mxu0 0.0
    %111 = vmatpush2.msra.mxu0 %v33
    %112 = vmatprep.subr.mxu0 0.0
    %113 = vmatpush2.msra.mxu0 %v32
    %114 = vmatprep.subr.mxu0 0.0
    %115 = vmatpush2.msra.mxu0 %v31
    %116 = vmatprep.subr.mxu0 0.0
    %117 = vmatpush2.msra.mxu0 %v30
    %118 = vmatprep.subr.mxu0 0.0
    %119 = vmatpush2.msra.mxu0 %v29
    %120 = vmatprep.mubr.f32.mxu0 %v53
    %121 = vmatmul.mubr.f32.gmra.mxu0 %v52
    %v122 = vpop.f32.mrf.mxu0
    %v123 = vadd.f32 0.0, %v122
    %v124 = vpop.f32.mrf.mxu0
    %125 = vdwg.mxu0
    %vm126 = vcmask 123904
    %127 = vst.msk [vmem:[#allocation2] sm:$0x3] %vm126, %v123
    // Predicated region
    $region10: #{tpu_custom_call.1} parent=1 // pred_check
      _
    $region11: #{tpu_custom_call.1} parent=1 // pred_check_branch
      %129 = sbr.rel (0) target = $region13
    $region12: #{tpu_custom_call.1} parent=1 // pred_region
      %s131 = ssub.s32 32, 32
      %132 = vsyncadd [#allocation3], %s131
      %s134 = sshll.u32 [#allocation2], 4
      %s135 = int_to_ptr.vmem [resolvable:$true] %s134
      %137 = dma.vmem_to_hbm [thread:$0]  %s135, 32, %s2, [#allocation3]
    $region13: #{tpu_custom_call.1} parent=1 // pred_fallthru
      _
    // Predicated region
    $region14: #{tpu_custom_call.1} parent=1 // pred_check
      _
    $region15: #{tpu_custom_call.1} parent=1 // pred_check_branch
      %139 = sbr.rel (0) target = $region17
    $region16: #{tpu_custom_call.1} parent=1 // pred_region
      %140 = dma.done [#allocation3], 32
    $region17: #{tpu_custom_call.1} parent=1 // pred_fallthru
      _
    %141 = vsyncpa [#allocation3], 1

</llo_original>
